<compile_context>
chip_gen: v5e
topology: v5e:2x2
jax: 0.10.0
libtpu: 0.0.40
codegen_flags: <defaults>
</compile_context>

<pallas_src>
import functools

import jax
import jax.numpy as jnp
from jax import lax
from jax.experimental import pallas as pl
from jax.experimental.pallas import tpu as pltpu


def _round_up(x, m):
    return ((x + m - 1) // m) * m


def lstm_kernel(pre_ref, len_ref, whh_ref, wl_ref, bl_ref, out_ref,
                h_sc, c_sc, *, hidden_dim, num_class, time_chunk):
    """One grid step = one (batch tile, time chunk).

    Fused gate order inside the kernel is (i, f, o, g).

    pre_ref : (TC, BB, 4H) f32   pre-computed x@W_ih + b for this chunk
    len_ref : (BB, 1)      i32   sequence lengths
    whh_ref : (H, 4H)      bf16  fused recurrent weight
    wl_ref  : (H, Cp)      bf16  classifier weight (lane-padded)
    bl_ref  : (1, Cp)      f32   classifier bias   (lane-padded)
    out_ref : (BB, Cp)     f32   log-probabilities (lane-padded)
    h_sc/c_sc: (BB, H)     f32   recurrent state carried across time chunks
    """
    H = hidden_dim
    tt = pl.program_id(1)

    # Reset state at the start of each batch tile's time sweep.
    @pl.when(tt == 0)
    def _():
        h_sc[...] = jnp.zeros_like(h_sc)
        c_sc[...] = jnp.zeros_like(c_sc)

    lengths = len_ref[...]                       # (BB, 1) int32, loaded once
    whh = whh_ref[...]                           # (H, 4H) bf16, loaded once
    t0 = tt * time_chunk

    h = h_sc[...]
    c = c_sc[...]
    # Statically unrolled chunk loop (chunk length bounded by the grid axis).
    for i in range(time_chunk):
        g = pre_ref[i] + jnp.dot(h.astype(jnp.bfloat16), whh,
                                 preferred_element_type=jnp.float32)  # (BB,4H)
        sig = jax.nn.sigmoid(g[:, :3 * H])       # (BB, 3H) -> i, f, o gates
        gg = jnp.tanh(g[:, 3 * H:])              # (BB, H)  -> candidate
        ig = sig[:, 0 * H:1 * H]
        fg = sig[:, 1 * H:2 * H]
        og = sig[:, 2 * H:3 * H]
        c_new = fg * c + ig * gg
        h_new = og * jnp.tanh(c_new)
        # packed-sequence semantics: freeze state once t >= length[b]
        alive = (t0 + i) < lengths               # (BB, 1) bool
        h = jnp.where(alive, h_new, h)
        c = jnp.where(alive, c_new, c)
    h_sc[...] = h
    c_sc[...] = c

    # Classifier + log_softmax only on the final time chunk.
    @pl.when(tt == pl.num_programs(1) - 1)
    def _():
        logits = (jnp.dot(h.astype(jnp.bfloat16), wl_ref[...],
                          preferred_element_type=jnp.float32)
                  + bl_ref[...])                                     # (BB, Cp)
        lane = lax.broadcasted_iota(jnp.int32, logits.shape, 1)
        logits = jnp.where(lane < num_class, logits, jnp.float32(-1e30))
        m = jnp.max(logits, axis=1, keepdims=True)
        shifted = logits - m
        lse = jnp.log(jnp.sum(jnp.exp(shifted), axis=1, keepdims=True))
        out_ref[...] = shifted - lse


def lstm_forward(inputs, lengths, params, *, time_chunk=8):
    """inputs: (B, T) int32 token ids; lengths: (B,) int32. Returns (B, C) f32."""
    emb_table, w_ih, w_hh, b_gates, w_lin, b_lin = params
    B, T = inputs.shape
    H = w_hh.shape[0]
    G = w_hh.shape[1]                     # 4H (multiple of 128 for H = 32)
    C = w_lin.shape[1]

    # Permute fused gate columns from PyTorch order (i, f, g, o) to the
    # kernel's (i, f, o, g) so the sigmoid gates are contiguous.
    perm = jnp.concatenate([jnp.arange(0, 2 * H),
                            jnp.arange(3 * H, 4 * H),
                            jnp.arange(2 * H, 3 * H)])
    w_ih_k = w_ih[:, perm]
    w_hh_k = w_hh[:, perm]
    b_k = b_gates[:, perm]

    # --- glue: embedding gather + hoisted input projection (parallel in T) ---
    # TODO(synk): the embedding gather stays in XLA glue; a fully fused
    # in-kernel gather would need scalar-prefetched token ids + manual DMA.
    x = jnp.take(emb_table, inputs, axis=0).astype(jnp.bfloat16)      # (B,T,E)
    pre = jnp.einsum('bte,eg->btg', x, w_ih_k.astype(jnp.bfloat16),
                     preferred_element_type=jnp.float32) + b_k        # (B,T,4H)
    pre = jnp.transpose(pre, (1, 0, 2))                               # (T,B,4H)

    # --- pad to TPU-friendly tiles ---
    TC = max(1, min(time_chunk, T))
    T_pad = _round_up(T, TC)
    B_pad = _round_up(B, 8)
    if B_pad > 128:
        B_pad = _round_up(B_pad, 128)
        BB = 128
    else:
        BB = B_pad
    C_pad = _round_up(C, 128)

    pre = jnp.pad(pre, ((0, T_pad - T), (0, B_pad - B), (0, 0)))
    len_col = jnp.pad(lengths.astype(jnp.int32), (0, B_pad - B)).reshape(B_pad, 1)
    whh_b = w_hh_k.astype(jnp.bfloat16)                                # (H,4H)
    wl_p = jnp.pad(w_lin, ((0, 0), (0, C_pad - C))).astype(jnp.bfloat16)
    bl_p = jnp.pad(b_lin, ((0, 0), (0, C_pad - C))).astype(jnp.float32)

    n_b = B_pad // BB
    n_t = T_pad // TC

    grid_spec = pltpu.PrefetchScalarGridSpec(
        num_scalar_prefetch=0,
        grid=(n_b, n_t),
        in_specs=[
            pl.BlockSpec((TC, BB, G), lambda bb, tt: (tt, bb, 0)),   # pre_gates
            pl.BlockSpec((BB, 1), lambda bb, tt: (bb, 0)),           # lengths
            pl.BlockSpec((H, G), lambda bb, tt: (0, 0)),             # W_hh
            pl.BlockSpec((H, C_pad), lambda bb, tt: (0, 0)),         # W_lin
            pl.BlockSpec((1, C_pad), lambda bb, tt: (0, 0)),         # b_lin
        ],
        out_specs=pl.BlockSpec((BB, C_pad), lambda bb, tt: (bb, 0)),
        scratch_shapes=[pltpu.VMEM((BB, H), jnp.float32),            # h state
                        pltpu.VMEM((BB, H), jnp.float32)],           # c state
    )

    out_pad = pl.pallas_call(
        functools.partial(lstm_kernel, hidden_dim=H, num_class=C,
                          time_chunk=TC),
        out_shape=jax.ShapeDtypeStruct((B_pad, C_pad), jnp.float32),
        grid_spec=grid_spec,
        compiler_params=pltpu.CompilerParams(
            dimension_semantics=("parallel", "arbitrary")),
    )(pre, len_col, whh_b, wl_p, bl_p)

    return out_pad[:B, :C]


def make_params(key, vocab_size, embedding_dim, hidden_dim, num_class):
    """Fused-gate layout: W_ih (E,4H), W_hh (H,4H), b (1,4H), gate order i,f,g,o
    (PyTorch nn.LSTM order)."""
    ks = jax.random.split(key, 7)
    bound = 1.0 / jnp.sqrt(hidden_dim)
    emb = jax.random.normal(ks[0], (vocab_size, embedding_dim), jnp.float32)
    w_ih = jax.random.uniform(ks[1], (embedding_dim, 4 * hidden_dim),
                              jnp.float32, -bound, bound)
    w_hh = jax.random.uniform(ks[2], (hidden_dim, 4 * hidden_dim),
                              jnp.float32, -bound, bound)
    b_ih = jax.random.uniform(ks[3], (1, 4 * hidden_dim), jnp.float32,
                              -bound, bound)
    b_hh = jax.random.uniform(ks[4], (1, 4 * hidden_dim), jnp.float32,
                              -bound, bound)
    b = b_ih + b_hh
    w_lin = jax.random.uniform(ks[5], (hidden_dim, num_class), jnp.float32,
                               -bound, bound)
    b_lin = jax.random.uniform(ks[6], (1, num_class), jnp.float32,
                               -bound, bound)
    return emb, w_ih, w_hh, b, w_lin, b_lin


def lstm_forward_ref(inputs, lengths, params):
    """Pure-JAX reference in the ORIGINAL (i, f, g, o) gate layout, mirroring
    the kernel's numerics (bf16 matmul operands, f32 state) and the PyTorch
    packed-sequence semantics."""
    emb_table, w_ih, w_hh, b_gates, w_lin, b_lin = params
    B, T = inputs.shape
    H = w_hh.shape[0]
    x = jnp.take(emb_table, inputs, axis=0).astype(jnp.bfloat16)
    pre = jnp.einsum('bte,eg->btg', x, w_ih.astype(jnp.bfloat16),
                     preferred_element_type=jnp.float32) + b_gates
    whh = w_hh.astype(jnp.bfloat16)
    h = jnp.zeros((B, H), jnp.float32)
    c = jnp.zeros((B, H), jnp.float32)
    for t in range(T):
        g = pre[:, t] + jnp.dot(h.astype(jnp.bfloat16), whh,
                                preferred_element_type=jnp.float32)
        ig = jax.nn.sigmoid(g[:, 0 * H:1 * H])
        fg = jax.nn.sigmoid(g[:, 1 * H:2 * H])
        gg = jnp.tanh(g[:, 2 * H:3 * H])
        og = jax.nn.sigmoid(g[:, 3 * H:4 * H])
        c_new = fg * c + ig * gg
        h_new = og * jnp.tanh(c_new)
        alive = (t < lengths).reshape(B, 1)
        h = jnp.where(alive, h_new, h)
        c = jnp.where(alive, c_new, c)
    logits = (jnp.dot(h.astype(jnp.bfloat16), w_lin.astype(jnp.bfloat16),
                      preferred_element_type=jnp.float32) + b_lin)
    return jax.nn.log_softmax(logits, axis=1)


if __name__ == "__main__":
    vocab_size, embedding_dim, hidden_dim, num_class = 50, 16, 32, 4
    B, T = 2, 8

    key = jax.random.PRNGKey(0)
    kp, ki = jax.random.split(key)
    params = make_params(kp, vocab_size, embedding_dim, hidden_dim, num_class)

    inputs = jax.random.randint(ki, (B, T), 0, vocab_size, dtype=jnp.int32)
    lengths = jnp.array([8, 5], dtype=jnp.int32)

    out = lstm_forward(inputs, lengths, params)
    out = jax.block_until_ready(out)

    ref = lstm_forward_ref(inputs, lengths, params)
    assert out.shape == (B, num_class)
    assert bool(jnp.all(jnp.isfinite(out)))
    assert jnp.allclose(out, ref, atol=1e-3, rtol=1e-3), (out, ref)

    print("KERNEL_OK")
</pallas_src>

<mosaic_0001>
module attributes {stable_mosaic.version = 11 : i64} {
  func.func @lstm_kernel(%arg0: i32, %arg1: i32, %arg2: memref<8x8x128xf32, #tpu.memory_space<vmem>>, %arg3: memref<8x1xi32, #tpu.memory_space<vmem>>, %arg4: memref<32x128xbf16, #tpu.memory_space<vmem>>, %arg5: memref<32x128xbf16, #tpu.memory_space<vmem>>, %arg6: memref<1x128xf32, #tpu.memory_space<vmem>>, %arg7: memref<8x128xf32, #tpu.memory_space<vmem>>, %arg8: memref<8x32xf32, #tpu.memory_space<vmem>>, %arg9: memref<8x32xf32, #tpu.memory_space<vmem>>) attributes {dimension_semantics = [#tpu.dimension_semantics<parallel>, #tpu.dimension_semantics<arbitrary>], iteration_bounds = array<i64: 1, 1>, scalar_prefetch = 0 : i64, scratch_operands = 2 : i64, tpu.core_type = #tpu.core_type<tc>, window_params = [{transform_indices = @transform_0, window_bounds = array<i64: 8, 8, 128>}, {transform_indices = @transform_1, window_bounds = array<i64: 8, 1>}, {pipeline_mode = #tpu.pipeline_mode<synchronous>, transform_indices = @transform_2, window_bounds = array<i64: 32, 128>}, {pipeline_mode = #tpu.pipeline_mode<synchronous>, transform_indices = @transform_3, window_bounds = array<i64: 32, 128>}, {pipeline_mode = #tpu.pipeline_mode<synchronous>, transform_indices = @transform_4, window_bounds = array<i64: 1, 128>}, {transform_indices = @transform_5, window_bounds = array<i64: 8, 128>}]} {
    %c0_i32 = arith.constant 0 : i32
    %0 = arith.cmpi eq, %arg1, %c0_i32 : i32
    %1 = arith.extui %0 : i1 to i32
    %c0_i32_0 = arith.constant 0 : i32
    %2 = arith.cmpi ne, %1, %c0_i32_0 : i32
    scf.if %2 {
      %cst_47 = arith.constant 0.000000e+00 : f32
      %253 = vector.broadcast %cst_47 : f32 to vector<8x32xf32>
      %c0_48 = arith.constant 0 : index
      %c0_49 = arith.constant 0 : index
      %254 = vector.load %arg8[%c0_48, %c0_49] : memref<8x32xf32, #tpu.memory_space<vmem>>, vector<8x32xf32>
      tpu.vector_store %arg8[%c0_48, %c0_49], %253 {strides = array<i32>} : memref<8x32xf32, #tpu.memory_space<vmem>>, vector<8x32xf32>,
      %cst_50 = arith.constant 0.000000e+00 : f32
      %255 = vector.broadcast %cst_50 : f32 to vector<8x32xf32>
      %c0_51 = arith.constant 0 : index
      %c0_52 = arith.constant 0 : index
      %256 = vector.load %arg9[%c0_51, %c0_52] : memref<8x32xf32, #tpu.memory_space<vmem>>, vector<8x32xf32>
      tpu.vector_store %arg9[%c0_51, %c0_52], %255 {strides = array<i32>} : memref<8x32xf32, #tpu.memory_space<vmem>>, vector<8x32xf32>,
    } else {
    }
    %c0 = arith.constant 0 : index
    %c0_1 = arith.constant 0 : index
    %3 = vector.load %arg3[%c0, %c0_1] : memref<8x1xi32, #tpu.memory_space<vmem>>, vector<8x1xi32>
    %c0_2 = arith.constant 0 : index
    %c0_3 = arith.constant 0 : index
    %4 = vector.load %arg4[%c0_2, %c0_3] : memref<32x128xbf16, #tpu.memory_space<vmem>>, vector<32x128xbf16>
    %c8_i32 = arith.constant 8 : i32
    %5 = arith.muli %arg1, %c8_i32 : i32
    %c0_4 = arith.constant 0 : index
    %c0_5 = arith.constant 0 : index
    %6 = vector.load %arg8[%c0_4, %c0_5] : memref<8x32xf32, #tpu.memory_space<vmem>>, vector<8x32xf32>
    %c0_6 = arith.constant 0 : index
    %c0_7 = arith.constant 0 : index
    %7 = vector.load %arg9[%c0_6, %c0_7] : memref<8x32xf32, #tpu.memory_space<vmem>>, vector<8x32xf32>
    %c0_8 = arith.constant 0 : index
    %c0_9 = arith.constant 0 : index
    %c0_10 = arith.constant 0 : index
    %8 = vector.load %arg2[%c0_8, %c0_9, %c0_10] : memref<8x8x128xf32, #tpu.memory_space<vmem>>, vector<1x8x128xf32>
    %9 = vector.shape_cast %8 : vector<1x8x128xf32> to vector<8x128xf32>
    %10 = arith.truncf %6 : vector<8x32xf32> to vector<8x32xbf16>
    %cst = arith.constant dense<0.000000e+00> : vector<8x128xf32>
    %11 = tpu.matmul %10, %4, %cst {dimension_numbers = #tpu.dot_dimension_numbers<[1], [0], [0], [1], [0, 0, 1, 1], [], []>} : vector<8x32xbf16>, vector<32x128xbf16>, vector<8x128xf32> -> vector<8x128xf32>
    %12 = arith.addf %9, %11 : vector<8x128xf32>
    %13 = vector.extract_strided_slice %12 {offsets = [0, 0], sizes = [8, 96], strides = [1, 1]} : vector<8x128xf32> to vector<8x96xf32>
    %14 = arith.negf %13 : vector<8x96xf32>
    %15 = math.exp %14 : vector<8x96xf32>
    %cst_11 = arith.constant 1.000000e+00 : f32
    %16 = vector.broadcast %cst_11 : f32 to vector<8x96xf32>
    %17 = arith.addf %16, %15 : vector<8x96xf32>
    %18 = arith.divf %16, %17 : vector<8x96xf32>
    %19 = vector.extract_strided_slice %12 {offsets = [0, 96], sizes = [8, 32], strides = [1, 1]} : vector<8x128xf32> to vector<8x32xf32>
    %20 = math.tanh %19 : vector<8x32xf32>
    %21 = vector.extract_strided_slice %18 {offsets = [0, 0], sizes = [8, 32], strides = [1, 1]} : vector<8x96xf32> to vector<8x32xf32>
    %22 = vector.extract_strided_slice %18 {offsets = [0, 32], sizes = [8, 32], strides = [1, 1]} : vector<8x96xf32> to vector<8x32xf32>
    %23 = vector.extract_strided_slice %18 {offsets = [0, 64], sizes = [8, 32], strides = [1, 1]} : vector<8x96xf32> to vector<8x32xf32>
    %24 = arith.mulf %22, %7 : vector<8x32xf32>
    %25 = arith.mulf %21, %20 : vector<8x32xf32>
    %26 = arith.addf %24, %25 : vector<8x32xf32>
    %27 = math.tanh %26 : vector<8x32xf32>
    %28 = arith.mulf %23, %27 : vector<8x32xf32>
    %c0_i32_12 = arith.constant 0 : i32
    %29 = arith.addi %5, %c0_i32_12 : i32
    %30 = vector.broadcast %29 : i32 to vector<8x1xi32>
    %31 = arith.cmpi slt, %30, %3 : vector<8x1xi32>
    %32 = vector.shape_cast %31 : vector<8x1xi1> to vector<8x1xi1>
    %33 = vector.broadcast %32 : vector<8x1xi1> to vector<8x32xi1>
    %34 = arith.select %33, %28, %6 : vector<8x32xi1>, vector<8x32xf32>
    %35 = vector.shape_cast %31 : vector<8x1xi1> to vector<8x1xi1>
    %36 = vector.broadcast %35 : vector<8x1xi1> to vector<8x32xi1>
    %37 = arith.select %36, %26, %7 : vector<8x32xi1>, vector<8x32xf32>
    %c1 = arith.constant 1 : index
    %c0_13 = arith.constant 0 : index
    %c0_14 = arith.constant 0 : index
    %38 = vector.load %arg2[%c1, %c0_13, %c0_14] : memref<8x8x128xf32, #tpu.memory_space<vmem>>, vector<1x8x128xf32>
    %39 = vector.shape_cast %38 : vector<1x8x128xf32> to vector<8x128xf32>
    %40 = arith.truncf %34 : vector<8x32xf32> to vector<8x32xbf16>
    %cst_15 = arith.constant dense<0.000000e+00> : vector<8x128xf32>
    %41 = tpu.matmul %40, %4, %cst_15 {dimension_numbers = #tpu.dot_dimension_numbers<[1], [0], [0], [1], [0, 0, 1, 1], [], []>} : vector<8x32xbf16>, vector<32x128xbf16>, vector<8x128xf32> -> vector<8x128xf32>
    %42 = arith.addf %39, %41 : vector<8x128xf32>
    %43 = vector.extract_strided_slice %42 {offsets = [0, 0], sizes = [8, 96], strides = [1, 1]} : vector<8x128xf32> to vector<8x96xf32>
    %44 = arith.negf %43 : vector<8x96xf32>
    %45 = math.exp %44 : vector<8x96xf32>
    %cst_16 = arith.constant 1.000000e+00 : f32
    %46 = vector.broadcast %cst_16 : f32 to vector<8x96xf32>
    %47 = arith.addf %46, %45 : vector<8x96xf32>
    %48 = arith.divf %46, %47 : vector<8x96xf32>
    %49 = vector.extract_strided_slice %42 {offsets = [0, 96], sizes = [8, 32], strides = [1, 1]} : vector<8x128xf32> to vector<8x32xf32>
    %50 = math.tanh %49 : vector<8x32xf32>
    %51 = vector.extract_strided_slice %48 {offsets = [0, 0], sizes = [8, 32], strides = [1, 1]} : vector<8x96xf32> to vector<8x32xf32>
    %52 = vector.extract_strided_slice %48 {offsets = [0, 32], sizes = [8, 32], strides = [1, 1]} : vector<8x96xf32> to vector<8x32xf32>
    %53 = vector.extract_strided_slice %48 {offsets = [0, 64], sizes = [8, 32], strides = [1, 1]} : vector<8x96xf32> to vector<8x32xf32>
    %54 = arith.mulf %52, %37 : vector<8x32xf32>
    %55 = arith.mulf %51, %50 : vector<8x32xf32>
    %56 = arith.addf %54, %55 : vector<8x32xf32>
    %57 = math.tanh %56 : vector<8x32xf32>
    %58 = arith.mulf %53, %57 : vector<8x32xf32>
    %c1_i32 = arith.constant 1 : i32
    %59 = arith.addi %5, %c1_i32 : i32
    %60 = vector.broadcast %59 : i32 to vector<8x1xi32>
    %61 = arith.cmpi slt, %60, %3 : vector<8x1xi32>
    %62 = vector.shape_cast %61 : vector<8x1xi1> to vector<8x1xi1>
    %63 = vector.broadcast %62 : vector<8x1xi1> to vector<8x32xi1>
    %64 = arith.select %63, %58, %34 : vector<8x32xi1>, vector<8x32xf32>
    %65 = vector.shape_cast %61 : vector<8x1xi1> to vector<8x1xi1>
    %66 = vector.broadcast %65 : vector<8x1xi1> to vector<8x32xi1>
    %67 = arith.select %66, %56, %37 : vector<8x32xi1>, vector<8x32xf32>
    %c2 = arith.constant 2 : index
    %c0_17 = arith.constant 0 : index
    %c0_18 = arith.constant 0 : index
    %68 = vector.load %arg2[%c2, %c0_17, %c0_18] : memref<8x8x128xf32, #tpu.memory_space<vmem>>, vector<1x8x128xf32>
    %69 = vector.shape_cast %68 : vector<1x8x128xf32> to vector<8x128xf32>
    %70 = arith.truncf %64 : vector<8x32xf32> to vector<8x32xbf16>
    %cst_19 = arith.constant dense<0.000000e+00> : vector<8x128xf32>
    %71 = tpu.matmul %70, %4, %cst_19 {dimension_numbers = #tpu.dot_dimension_numbers<[1], [0], [0], [1], [0, 0, 1, 1], [], []>} : vector<8x32xbf16>, vector<32x128xbf16>, vector<8x128xf32> -> vector<8x128xf32>
    %72 = arith.addf %69, %71 : vector<8x128xf32>
    %73 = vector.extract_strided_slice %72 {offsets = [0, 0], sizes = [8, 96], strides = [1, 1]} : vector<8x128xf32> to vector<8x96xf32>
    %74 = arith.negf %73 : vector<8x96xf32>
    %75 = math.exp %74 : vector<8x96xf32>
    %cst_20 = arith.constant 1.000000e+00 : f32
    %76 = vector.broadcast %cst_20 : f32 to vector<8x96xf32>
    %77 = arith.addf %76, %75 : vector<8x96xf32>
    %78 = arith.divf %76, %77 : vector<8x96xf32>
    %79 = vector.extract_strided_slice %72 {offsets = [0, 96], sizes = [8, 32], strides = [1, 1]} : vector<8x128xf32> to vector<8x32xf32>
    %80 = math.tanh %79 : vector<8x32xf32>
    %81 = vector.extract_strided_slice %78 {offsets = [0, 0], sizes = [8, 32], strides = [1, 1]} : vector<8x96xf32> to vector<8x32xf32>
    %82 = vector.extract_strided_slice %78 {offsets = [0, 32], sizes = [8, 32], strides = [1, 1]} : vector<8x96xf32> to vector<8x32xf32>
    %83 = vector.extract_strided_slice %78 {offsets = [0, 64], sizes = [8, 32], strides = [1, 1]} : vector<8x96xf32> to vector<8x32xf32>
    %84 = arith.mulf %82, %67 : vector<8x32xf32>
    %85 = arith.mulf %81, %80 : vector<8x32xf32>
    %86 = arith.addf %84, %85 : vector<8x32xf32>
    %87 = math.tanh %86 : vector<8x32xf32>
    %88 = arith.mulf %83, %87 : vector<8x32xf32>
    %c2_i32 = arith.constant 2 : i32
    %89 = arith.addi %5, %c2_i32 : i32
    %90 = vector.broadcast %89 : i32 to vector<8x1xi32>
    %91 = arith.cmpi slt, %90, %3 : vector<8x1xi32>
    %92 = vector.shape_cast %91 : vector<8x1xi1> to vector<8x1xi1>
    %93 = vector.broadcast %92 : vector<8x1xi1> to vector<8x32xi1>
    %94 = arith.select %93, %88, %64 : vector<8x32xi1>, vector<8x32xf32>
    %95 = vector.shape_cast %91 : vector<8x1xi1> to vector<8x1xi1>
    %96 = vector.broadcast %95 : vector<8x1xi1> to vector<8x32xi1>
    %97 = arith.select %96, %86, %67 : vector<8x32xi1>, vector<8x32xf32>
    %c3 = arith.constant 3 : index
    %c0_21 = arith.constant 0 : index
    %c0_22 = arith.constant 0 : index
    %98 = vector.load %arg2[%c3, %c0_21, %c0_22] : memref<8x8x128xf32, #tpu.memory_space<vmem>>, vector<1x8x128xf32>
    %99 = vector.shape_cast %98 : vector<1x8x128xf32> to vector<8x128xf32>
    %100 = arith.truncf %94 : vector<8x32xf32> to vector<8x32xbf16>
    %cst_23 = arith.constant dense<0.000000e+00> : vector<8x128xf32>
    %101 = tpu.matmul %100, %4, %cst_23 {dimension_numbers = #tpu.dot_dimension_numbers<[1], [0], [0], [1], [0, 0, 1, 1], [], []>} : vector<8x32xbf16>, vector<32x128xbf16>, vector<8x128xf32> -> vector<8x128xf32>
    %102 = arith.addf %99, %101 : vector<8x128xf32>
    %103 = vector.extract_strided_slice %102 {offsets = [0, 0], sizes = [8, 96], strides = [1, 1]} : vector<8x128xf32> to vector<8x96xf32>
    %104 = arith.negf %103 : vector<8x96xf32>
    %105 = math.exp %104 : vector<8x96xf32>
    %cst_24 = arith.constant 1.000000e+00 : f32
    %106 = vector.broadcast %cst_24 : f32 to vector<8x96xf32>
    %107 = arith.addf %106, %105 : vector<8x96xf32>
    %108 = arith.divf %106, %107 : vector<8x96xf32>
    %109 = vector.extract_strided_slice %102 {offsets = [0, 96], sizes = [8, 32], strides = [1, 1]} : vector<8x128xf32> to vector<8x32xf32>
    %110 = math.tanh %109 : vector<8x32xf32>
    %111 = vector.extract_strided_slice %108 {offsets = [0, 0], sizes = [8, 32], strides = [1, 1]} : vector<8x96xf32> to vector<8x32xf32>
    %112 = vector.extract_strided_slice %108 {offsets = [0, 32], sizes = [8, 32], strides = [1, 1]} : vector<8x96xf32> to vector<8x32xf32>
    %113 = vector.extract_strided_slice %108 {offsets = [0, 64], sizes = [8, 32], strides = [1, 1]} : vector<8x96xf32> to vector<8x32xf32>
    %114 = arith.mulf %112, %97 : vector<8x32xf32>
    %115 = arith.mulf %111, %110 : vector<8x32xf32>
    %116 = arith.addf %114, %115 : vector<8x32xf32>
    %117 = math.tanh %116 : vector<8x32xf32>
    %118 = arith.mulf %113, %117 : vector<8x32xf32>
    %c3_i32 = arith.constant 3 : i32
    %119 = arith.addi %5, %c3_i32 : i32
    %120 = vector.broadcast %119 : i32 to vector<8x1xi32>
    %121 = arith.cmpi slt, %120, %3 : vector<8x1xi32>
    %122 = vector.shape_cast %121 : vector<8x1xi1> to vector<8x1xi1>
    %123 = vector.broadcast %122 : vector<8x1xi1> to vector<8x32xi1>
    %124 = arith.select %123, %118, %94 : vector<8x32xi1>, vector<8x32xf32>
    %125 = vector.shape_cast %121 : vector<8x1xi1> to vector<8x1xi1>
    %126 = vector.broadcast %125 : vector<8x1xi1> to vector<8x32xi1>
    %127 = arith.select %126, %116, %97 : vector<8x32xi1>, vector<8x32xf32>
    %c4 = arith.constant 4 : index
    %c0_25 = arith.constant 0 : index
    %c0_26 = arith.constant 0 : index
    %128 = vector.load %arg2[%c4, %c0_25, %c0_26] : memref<8x8x128xf32, #tpu.memory_space<vmem>>, vector<1x8x128xf32>
    %129 = vector.shape_cast %128 : vector<1x8x128xf32> to vector<8x128xf32>
    %130 = arith.truncf %124 : vector<8x32xf32> to vector<8x32xbf16>
    %cst_27 = arith.constant dense<0.000000e+00> : vector<8x128xf32>
    %131 = tpu.matmul %130, %4, %cst_27 {dimension_numbers = #tpu.dot_dimension_numbers<[1], [0], [0], [1], [0, 0, 1, 1], [], []>} : vector<8x32xbf16>, vector<32x128xbf16>, vector<8x128xf32> -> vector<8x128xf32>
    %132 = arith.addf %129, %131 : vector<8x128xf32>
    %133 = vector.extract_strided_slice %132 {offsets = [0, 0], sizes = [8, 96], strides = [1, 1]} : vector<8x128xf32> to vector<8x96xf32>
    %134 = arith.negf %133 : vector<8x96xf32>
    %135 = math.exp %134 : vector<8x96xf32>
    %cst_28 = arith.constant 1.000000e+00 : f32
    %136 = vector.broadcast %cst_28 : f32 to vector<8x96xf32>
    %137 = arith.addf %136, %135 : vector<8x96xf32>
    %138 = arith.divf %136, %137 : vector<8x96xf32>
    %139 = vector.extract_strided_slice %132 {offsets = [0, 96], sizes = [8, 32], strides = [1, 1]} : vector<8x128xf32> to vector<8x32xf32>
    %140 = math.tanh %139 : vector<8x32xf32>
    %141 = vector.extract_strided_slice %138 {offsets = [0, 0], sizes = [8, 32], strides = [1, 1]} : vector<8x96xf32> to vector<8x32xf32>
    %142 = vector.extract_strided_slice %138 {offsets = [0, 32], sizes = [8, 32], strides = [1, 1]} : vector<8x96xf32> to vector<8x32xf32>
    %143 = vector.extract_strided_slice %138 {offsets = [0, 64], sizes = [8, 32], strides = [1, 1]} : vector<8x96xf32> to vector<8x32xf32>
    %144 = arith.mulf %142, %127 : vector<8x32xf32>
    %145 = arith.mulf %141, %140 : vector<8x32xf32>
    %146 = arith.addf %144, %145 : vector<8x32xf32>
    %147 = math.tanh %146 : vector<8x32xf32>
    %148 = arith.mulf %143, %147 : vector<8x32xf32>
    %c4_i32 = arith.constant 4 : i32
    %149 = arith.addi %5, %c4_i32 : i32
    %150 = vector.broadcast %149 : i32 to vector<8x1xi32>
    %151 = arith.cmpi slt, %150, %3 : vector<8x1xi32>
    %152 = vector.shape_cast %151 : vector<8x1xi1> to vector<8x1xi1>
    %153 = vector.broadcast %152 : vector<8x1xi1> to vector<8x32xi1>
    %154 = arith.select %153, %148, %124 : vector<8x32xi1>, vector<8x32xf32>
    %155 = vector.shape_cast %151 : vector<8x1xi1> to vector<8x1xi1>
    %156 = vector.broadcast %155 : vector<8x1xi1> to vector<8x32xi1>
    %157 = arith.select %156, %146, %127 : vector<8x32xi1>, vector<8x32xf32>
    %c5 = arith.constant 5 : index
    %c0_29 = arith.constant 0 : index
    %c0_30 = arith.constant 0 : index
    %158 = vector.load %arg2[%c5, %c0_29, %c0_30] : memref<8x8x128xf32, #tpu.memory_space<vmem>>, vector<1x8x128xf32>
    %159 = vector.shape_cast %158 : vector<1x8x128xf32> to vector<8x128xf32>
    %160 = arith.truncf %154 : vector<8x32xf32> to vector<8x32xbf16>
    %cst_31 = arith.constant dense<0.000000e+00> : vector<8x128xf32>
    %161 = tpu.matmul %160, %4, %cst_31 {dimension_numbers = #tpu.dot_dimension_numbers<[1], [0], [0], [1], [0, 0, 1, 1], [], []>} : vector<8x32xbf16>, vector<32x128xbf16>, vector<8x128xf32> -> vector<8x128xf32>
    %162 = arith.addf %159, %161 : vector<8x128xf32>
    %163 = vector.extract_strided_slice %162 {offsets = [0, 0], sizes = [8, 96], strides = [1, 1]} : vector<8x128xf32> to vector<8x96xf32>
    %164 = arith.negf %163 : vector<8x96xf32>
    %165 = math.exp %164 : vector<8x96xf32>
    %cst_32 = arith.constant 1.000000e+00 : f32
    %166 = vector.broadcast %cst_32 : f32 to vector<8x96xf32>
    %167 = arith.addf %166, %165 : vector<8x96xf32>
    %168 = arith.divf %166, %167 : vector<8x96xf32>
    %169 = vector.extract_strided_slice %162 {offsets = [0, 96], sizes = [8, 32], strides = [1, 1]} : vector<8x128xf32> to vector<8x32xf32>
    %170 = math.tanh %169 : vector<8x32xf32>
    %171 = vector.extract_strided_slice %168 {offsets = [0, 0], sizes = [8, 32], strides = [1, 1]} : vector<8x96xf32> to vector<8x32xf32>
    %172 = vector.extract_strided_slice %168 {offsets = [0, 32], sizes = [8, 32], strides = [1, 1]} : vector<8x96xf32> to vector<8x32xf32>
    %173 = vector.extract_strided_slice %168 {offsets = [0, 64], sizes = [8, 32], strides = [1, 1]} : vector<8x96xf32> to vector<8x32xf32>
    %174 = arith.mulf %172, %157 : vector<8x32xf32>
    %175 = arith.mulf %171, %170 : vector<8x32xf32>
    %176 = arith.addf %174, %175 : vector<8x32xf32>
    %177 = math.tanh %176 : vector<8x32xf32>
    %178 = arith.mulf %173, %177 : vector<8x32xf32>
    %c5_i32 = arith.constant 5 : i32
    %179 = arith.addi %5, %c5_i32 : i32
    %180 = vector.broadcast %179 : i32 to vector<8x1xi32>
    %181 = arith.cmpi slt, %180, %3 : vector<8x1xi32>
    %182 = vector.shape_cast %181 : vector<8x1xi1> to vector<8x1xi1>
    %183 = vector.broadcast %182 : vector<8x1xi1> to vector<8x32xi1>
    %184 = arith.select %183, %178, %154 : vector<8x32xi1>, vector<8x32xf32>
    %185 = vector.shape_cast %181 : vector<8x1xi1> to vector<8x1xi1>
    %186 = vector.broadcast %185 : vector<8x1xi1> to vector<8x32xi1>
    %187 = arith.select %186, %176, %157 : vector<8x32xi1>, vector<8x32xf32>
    %c6 = arith.constant 6 : index
    %c0_33 = arith.constant 0 : index
    %c0_34 = arith.constant 0 : index
    %188 = vector.load %arg2[%c6, %c0_33, %c0_34] : memref<8x8x128xf32, #tpu.memory_space<vmem>>, vector<1x8x128xf32>
    %189 = vector.shape_cast %188 : vector<1x8x128xf32> to vector<8x128xf32>
    %190 = arith.truncf %184 : vector<8x32xf32> to vector<8x32xbf16>
    %cst_35 = arith.constant dense<0.000000e+00> : vector<8x128xf32>
    %191 = tpu.matmul %190, %4, %cst_35 {dimension_numbers = #tpu.dot_dimension_numbers<[1], [0], [0], [1], [0, 0, 1, 1], [], []>} : vector<8x32xbf16>, vector<32x128xbf16>, vector<8x128xf32> -> vector<8x128xf32>
    %192 = arith.addf %189, %191 : vector<8x128xf32>
    %193 = vector.extract_strided_slice %192 {offsets = [0, 0], sizes = [8, 96], strides = [1, 1]} : vector<8x128xf32> to vector<8x96xf32>
    %194 = arith.negf %193 : vector<8x96xf32>
    %195 = math.exp %194 : vector<8x96xf32>
    %cst_36 = arith.constant 1.000000e+00 : f32
    %196 = vector.broadcast %cst_36 : f32 to vector<8x96xf32>
    %197 = arith.addf %196, %195 : vector<8x96xf32>
    %198 = arith.divf %196, %197 : vector<8x96xf32>
    %199 = vector.extract_strided_slice %192 {offsets = [0, 96], sizes = [8, 32], strides = [1, 1]} : vector<8x128xf32> to vector<8x32xf32>
    %200 = math.tanh %199 : vector<8x32xf32>
    %201 = vector.extract_strided_slice %198 {offsets = [0, 0], sizes = [8, 32], strides = [1, 1]} : vector<8x96xf32> to vector<8x32xf32>
    %202 = vector.extract_strided_slice %198 {offsets = [0, 32], sizes = [8, 32], strides = [1, 1]} : vector<8x96xf32> to vector<8x32xf32>
    %203 = vector.extract_strided_slice %198 {offsets = [0, 64], sizes = [8, 32], strides = [1, 1]} : vector<8x96xf32> to vector<8x32xf32>
    %204 = arith.mulf %202, %187 : vector<8x32xf32>
    %205 = arith.mulf %201, %200 : vector<8x32xf32>
    %206 = arith.addf %204, %205 : vector<8x32xf32>
    %207 = math.tanh %206 : vector<8x32xf32>
    %208 = arith.mulf %203, %207 : vector<8x32xf32>
    %c6_i32 = arith.constant 6 : i32
    %209 = arith.addi %5, %c6_i32 : i32
    %210 = vector.broadcast %209 : i32 to vector<8x1xi32>
    %211 = arith.cmpi slt, %210, %3 : vector<8x1xi32>
    %212 = vector.shape_cast %211 : vector<8x1xi1> to vector<8x1xi1>
    %213 = vector.broadcast %212 : vector<8x1xi1> to vector<8x32xi1>
    %214 = arith.select %213, %208, %184 : vector<8x32xi1>, vector<8x32xf32>
    %215 = vector.shape_cast %211 : vector<8x1xi1> to vector<8x1xi1>
    %216 = vector.broadcast %215 : vector<8x1xi1> to vector<8x32xi1>
    %217 = arith.select %216, %206, %187 : vector<8x32xi1>, vector<8x32xf32>
    %c7 = arith.constant 7 : index
    %c0_37 = arith.constant 0 : index
    %c0_38 = arith.constant 0 : index
    %218 = vector.load %arg2[%c7, %c0_37, %c0_38] : memref<8x8x128xf32, #tpu.memory_space<vmem>>, vector<1x8x128xf32>
    %219 = vector.shape_cast %218 : vector<1x8x128xf32> to vector<8x128xf32>
    %220 = arith.truncf %214 : vector<8x32xf32> to vector<8x32xbf16>
    %cst_39 = arith.constant dense<0.000000e+00> : vector<8x128xf32>
    %221 = tpu.matmul %220, %4, %cst_39 {dimension_numbers = #tpu.dot_dimension_numbers<[1], [0], [0], [1], [0, 0, 1, 1], [], []>} : vector<8x32xbf16>, vector<32x128xbf16>, vector<8x128xf32> -> vector<8x128xf32>
    %222 = arith.addf %219, %221 : vector<8x128xf32>
    %223 = vector.extract_strided_slice %222 {offsets = [0, 0], sizes = [8, 96], strides = [1, 1]} : vector<8x128xf32> to vector<8x96xf32>
    %224 = arith.negf %223 : vector<8x96xf32>
    %225 = math.exp %224 : vector<8x96xf32>
    %cst_40 = arith.constant 1.000000e+00 : f32
    %226 = vector.broadcast %cst_40 : f32 to vector<8x96xf32>
    %227 = arith.addf %226, %225 : vector<8x96xf32>
    %228 = arith.divf %226, %227 : vector<8x96xf32>
    %229 = vector.extract_strided_slice %222 {offsets = [0, 96], sizes = [8, 32], strides = [1, 1]} : vector<8x128xf32> to vector<8x32xf32>
    %230 = math.tanh %229 : vector<8x32xf32>
    %231 = vector.extract_strided_slice %228 {offsets = [0, 0], sizes = [8, 32], strides = [1, 1]} : vector<8x96xf32> to vector<8x32xf32>
    %232 = vector.extract_strided_slice %228 {offsets = [0, 32], sizes = [8, 32], strides = [1, 1]} : vector<8x96xf32> to vector<8x32xf32>
    %233 = vector.extract_strided_slice %228 {offsets = [0, 64], sizes = [8, 32], strides = [1, 1]} : vector<8x96xf32> to vector<8x32xf32>
    %234 = arith.mulf %232, %217 : vector<8x32xf32>
    %235 = arith.mulf %231, %230 : vector<8x32xf32>
    %236 = arith.addf %234, %235 : vector<8x32xf32>
    %237 = math.tanh %236 : vector<8x32xf32>
    %238 = arith.mulf %233, %237 : vector<8x32xf32>
    %c7_i32 = arith.constant 7 : i32
    %239 = arith.addi %5, %c7_i32 : i32
    %240 = vector.broadcast %239 : i32 to vector<8x1xi32>
    %241 = arith.cmpi slt, %240, %3 : vector<8x1xi32>
    %242 = vector.shape_cast %241 : vector<8x1xi1> to vector<8x1xi1>
    %243 = vector.broadcast %242 : vector<8x1xi1> to vector<8x32xi1>
    %244 = arith.select %243, %238, %214 : vector<8x32xi1>, vector<8x32xf32>
    %245 = vector.shape_cast %241 : vector<8x1xi1> to vector<8x1xi1>
    %246 = vector.broadcast %245 : vector<8x1xi1> to vector<8x32xi1>
    %247 = arith.select %246, %236, %217 : vector<8x32xi1>, vector<8x32xf32>
    %c0_41 = arith.constant 0 : index
    %c0_42 = arith.constant 0 : index
    %248 = vector.load %arg8[%c0_41, %c0_42] : memref<8x32xf32, #tpu.memory_space<vmem>>, vector<8x32xf32>
    tpu.vector_store %arg8[%c0_41, %c0_42], %244 {strides = array<i32>} : memref<8x32xf32, #tpu.memory_space<vmem>>, vector<8x32xf32>,
    %c0_43 = arith.constant 0 : index
    %c0_44 = arith.constant 0 : index
    %249 = vector.load %arg9[%c0_43, %c0_44] : memref<8x32xf32, #tpu.memory_space<vmem>>, vector<8x32xf32>
    tpu.vector_store %arg9[%c0_43, %c0_44], %247 {strides = array<i32>} : memref<8x32xf32, #tpu.memory_space<vmem>>, vector<8x32xf32>,
    %c0_i32_45 = arith.constant 0 : i32
    %250 = arith.cmpi eq, %arg1, %c0_i32_45 : i32
    %251 = arith.extui %250 : i1 to i32
    %c0_i32_46 = arith.constant 0 : i32
    %252 = arith.cmpi ne, %251, %c0_i32_46 : i32
    scf.if %252 {
      %253 = arith.truncf %244 : vector<8x32xf32> to vector<8x32xbf16>
      %c0_47 = arith.constant 0 : index
      %c0_48 = arith.constant 0 : index
      %254 = vector.load %arg5[%c0_47, %c0_48] : memref<32x128xbf16, #tpu.memory_space<vmem>>, vector<32x128xbf16>
      %cst_49 = arith.constant dense<0.000000e+00> : vector<8x128xf32>
      %255 = tpu.matmul %253, %254, %cst_49 {dimension_numbers = #tpu.dot_dimension_numbers<[1], [0], [0], [1], [0, 0, 1, 1], [], []>} : vector<8x32xbf16>, vector<32x128xbf16>, vector<8x128xf32> -> vector<8x128xf32>
      %c0_50 = arith.constant 0 : index
      %c0_51 = arith.constant 0 : index
      %256 = vector.load %arg6[%c0_50, %c0_51] : memref<1x128xf32, #tpu.memory_space<vmem>>, vector<1x128xf32>
      %257 = vector.broadcast %256 : vector<1x128xf32> to vector<8x128xf32>
      %258 = arith.addf %255, %257 : vector<8x128xf32>
      %259 = tpu.iota {dimensions = array<i32: 1>} : vector<8x128xi32>
      %c4_i32_52 = arith.constant 4 : i32
      %260 = vector.broadcast %c4_i32_52 : i32 to vector<8x128xi32>
      %261 = arith.cmpi slt, %259, %260 : vector<8x128xi32>
      %cst_53 = arith.constant -1.000000e+30 : f32
      %262 = vector.broadcast %cst_53 : f32 to vector<8x128xf32>
      %263 = arith.select %261, %258, %262 : vector<8x128xi1>, vector<8x128xf32>
      %cst_54 = arith.constant dense<0xFF800000> : vector<8xf32>
      %264 = vector.multi_reduction <maximumf>, %263, %cst_54 [1] : vector<8x128xf32> to vector<8xf32>
      %265 = vector.shape_cast %264 : vector<8xf32> to vector<8x1xf32>
      %266 = vector.broadcast %265 : vector<8x1xf32> to vector<8x128xf32>
      %267 = arith.subf %263, %266 : vector<8x128xf32>
      %268 = math.exp %267 : vector<8x128xf32>
      %cst_55 = arith.constant dense<0.000000e+00> : vector<8xf32>
      %269 = vector.multi_reduction <add>, %268, %cst_55 [1] : vector<8x128xf32> to vector<8xf32>
      %270 = vector.shape_cast %269 : vector<8xf32> to vector<8x1xf32>
      %271 = math.log %270 : vector<8x1xf32>
      %272 = vector.broadcast %271 : vector<8x1xf32> to vector<8x128xf32>
      %273 = arith.subf %267, %272 : vector<8x128xf32>
      %c0_56 = arith.constant 0 : index
      %c0_57 = arith.constant 0 : index
      %274 = vector.load %arg7[%c0_56, %c0_57] : memref<8x128xf32, #tpu.memory_space<vmem>>, vector<8x128xf32>
      tpu.vector_store %arg7[%c0_56, %c0_57], %273 {strides = array<i32>} : memref<8x128xf32, #tpu.memory_space<vmem>>, vector<8x128xf32>,
    } else {
    }
    return
  }
  func.func @transform_0(%arg0: i32, %arg1: i32) -> (i32, i32, i32) {
    %c0_i32 = arith.constant 0 : i32
    %c0_i32_0 = arith.constant 0 : i32
    return %arg1, %arg0, %c0_i32 : i32, i32, i32
  }
  func.func @transform_1(%arg0: i32, %arg1: i32) -> (i32, i32) {
    %c0_i32 = arith.constant 0 : i32
    %c0_i32_0 = arith.constant 0 : i32
    return %arg0, %c0_i32 : i32, i32
  }
  func.func @transform_2(%arg0: i32, %arg1: i32) -> (i32, i32) {
    %c0_i32 = arith.constant 0 : i32
    %c0_i32_0 = arith.constant 0 : i32
    %c0_i32_1 = arith.constant 0 : i32
    return %c0_i32, %c0_i32_0 : i32, i32
  }
  func.func @transform_3(%arg0: i32, %arg1: i32) -> (i32, i32) {
    %c0_i32 = arith.constant 0 : i32
    %c0_i32_0 = arith.constant 0 : i32
    %c0_i32_1 = arith.constant 0 : i32
    return %c0_i32, %c0_i32_0 : i32, i32
  }
  func.func @transform_4(%arg0: i32, %arg1: i32) -> (i32, i32) {
    %c0_i32 = arith.constant 0 : i32
    %c0_i32_0 = arith.constant 0 : i32
    %c0_i32_1 = arith.constant 0 : i32
    return %c0_i32, %c0_i32_0 : i32, i32
  }
  func.func @transform_5(%arg0: i32, %arg1: i32) -> (i32, i32) {
    %c0_i32 = arith.constant 0 : i32
    %c0_i32_0 = arith.constant 0 : i32
    return %arg0, %c0_i32 : i32, i32
  }
}

</mosaic_0001>

<llo_original>
// kernel: tpu_custom_call.1
$region0: #{tpu_custom_call.1}
  #allocation0 [shape = 'u32[]', space=smem, size = 0x4, offset = 0x4, fixed_abs, tag = 'smem constant byte address 0x4 - core index']
  #allocation1 [shape = 'u32[72,128]{1,0:T(1,128)}', space=vmem, size = 0x9000, scoped, tag = 'internal scratch']
  #allocation2 [shape = 'f32[8,32]{1,0:T(8,128)}', space=vmem, size = 0x1000, scoped, tag = 'scratch operand']
  #allocation3 [shape = 'f32[8,32]{1,0:T(8,128)}', space=vmem, size = 0x1000, scoped, tag = 'scratch operand']
  %s0 = inlined_call_operand.hbm [shape: f32[8,8,128], index: 0, kind: input, shape index: {}]
  %s1 = inlined_call_operand.vmem [shape: s32[8,1], index: 1, kind: input, shape index: {}]
  %s2 = inlined_call_operand.hbm [shape: bf16[32,128], index: 2, kind: input, shape index: {}]
  %s3 = inlined_call_operand.hbm [shape: bf16[32,128], index: 3, kind: input, shape index: {}]
  %s4 = inlined_call_operand.vmem [shape: f32[1,128], index: 4, kind: input, shape index: {}]
  %s5 = inlined_call_operand.hbm [shape: f32[8,128], index: 5, kind: output, shape index: {}]
  %s6 = sld [smem:[#allocation0]]
  $region50: #{tpu_custom_call.1} parent=0
    _
  %s8 = ssub.s32 1, %s6
  %s9 = scalar_select 0, %s8, %s6
  $region1: #{tpu_custom_call.1} parent=0
    #allocation4 [shape = 'u8[32768]{0}', space=vmem, size = 0x8000, scoped, tag = 'input window, operand 0, single buffered']
    #allocation5 [shape = 's32[1]{0}', space=sflag, size = 0x4, scoped, tag = 'scoped memory for tpu_custom_call.1']
    #allocation6 [shape = 's32[1]{0}', space=sflag, size = 0x4, scoped, tag = 'scoped memory for tpu_custom_call.1']
    #allocation7 [shape = 'u8[8192]{0}', space=vmem, size = 0x2000, scoped, tag = 'input window, operand 2, single buffered']
    #allocation8 [shape = 's32[1]{0}', space=sflag, size = 0x4, scoped, tag = 'scoped memory for tpu_custom_call.1']
    #allocation9 [shape = 'u8[8192]{0}', space=vmem, size = 0x2000, scoped, tag = 'input window, operand 3, single buffered']
    #allocation10 [shape = 'u8[4096]{0}', space=vmem, size = 0x1000, scoped, tag = 'output window, operand 0, single buffered']
    %10 = vsyncpa [#allocation5], 0
    %11 = vsyncpa [#allocation8], 0
    %12 = vsyncpa [#allocation6], 0
    // Predicated region
    $region2: #{tpu_custom_call.1} parent=1 // pred_check
      _
    $region3: #{tpu_custom_call.1} parent=1 // pred_check_branch
      %14 = sbr.rel (0) target = $region5
    $region4: #{tpu_custom_call.1} parent=1 // pred_region
      %16 = vsyncadd [#allocation5], 0
      %s17 = sshll.u32 %s0, 4
      %s18 = int_to_ptr.hbm [resolvable:$true] %s17
      %s19 = sshll.u32 [#allocation4], 4
      %s20 = int_to_ptr.vmem [resolvable:$true] %s19
      %25 = dma.hbm_to_vmem [thread:$0]  %s18, 1024, %s20, [#allocation5], 128, 128, 8
    $region5: #{tpu_custom_call.1} parent=1 // pred_fallthru
      _
    // Predicated region
    $region6: #{tpu_custom_call.1} parent=1 // pred_check
      _
    $region7: #{tpu_custom_call.1} parent=1 // pred_check_branch
      %27 = sbr.rel (0) target = $region9
    $region8: #{tpu_custom_call.1} parent=1 // pred_region
      _
    $region9: #{tpu_custom_call.1} parent=1 // pred_fallthru
      _
    // Predicated region
    $region10: #{tpu_custom_call.1} parent=1 // pred_check
      _
    $region11: #{tpu_custom_call.1} parent=1 // pred_check_branch
      %29 = sbr.rel (0) target = $region13
    $region12: #{tpu_custom_call.1} parent=1 // pred_region
      %31 = vsyncadd [#allocation8], 0
      %s32 = sshll.u32 %s2, 4
      %s33 = int_to_ptr.hbm [resolvable:$true] %s32
      %s34 = sshll.u32 [#allocation7], 4
      %s35 = int_to_ptr.vmem [resolvable:$true] %s34
      %40 = dma.hbm_to_vmem [thread:$0]  %s33, 256, %s35, [#allocation8], 64, 64, 4
    $region13: #{tpu_custom_call.1} parent=1 // pred_fallthru
      _
    // Predicated region
    $region14: #{tpu_custom_call.1} parent=1 // pred_check
      _
    $region15: #{tpu_custom_call.1} parent=1 // pred_check_branch
      %42 = sbr.rel (0) target = $region17
    $region16: #{tpu_custom_call.1} parent=1 // pred_region
      %44 = vsyncadd [#allocation8], 0
      %s45 = sshll.u32 %s3, 4
      %s46 = int_to_ptr.hbm [resolvable:$true] %s45
      %s47 = sshll.u32 [#allocation9], 4
      %s48 = int_to_ptr.vmem [resolvable:$true] %s47
      %53 = dma.hbm_to_vmem [thread:$0]  %s46, 256, %s48, [#allocation8], 64, 64, 4
    $region17: #{tpu_custom_call.1} parent=1 // pred_fallthru
      _
    // Predicated region
    $region18: #{tpu_custom_call.1} parent=1 // pred_check
      _
    $region19: #{tpu_custom_call.1} parent=1 // pred_check_branch
      %55 = sbr.rel (0) target = $region21
    $region20: #{tpu_custom_call.1} parent=1 // pred_region
      _
    $region21: #{tpu_custom_call.1} parent=1 // pred_fallthru
      _
    // Predicated region
    $region22: #{tpu_custom_call.1} parent=1 // pred_check
      _
    $region23: #{tpu_custom_call.1} parent=1 // pred_check_branch
      %57 = sbr.rel (0) target = $region25
    $region24: #{tpu_custom_call.1} parent=1 // pred_region
      %59 = dma.done [#allocation5], 1024
    $region25: #{tpu_custom_call.1} parent=1 // pred_fallthru
      _
    // Predicated region
    $region26: #{tpu_custom_call.1} parent=1 // pred_check
      _
    $region27: #{tpu_custom_call.1} parent=1 // pred_check_branch
      %61 = sbr.rel (0) target = $region29
    $region28: #{tpu_custom_call.1} parent=1 // pred_region
      %63 = dma.done [#allocation8], 256
    $region29: #{tpu_custom_call.1} parent=1 // pred_fallthru
      _
    // Predicated region
    $region30: #{tpu_custom_call.1} parent=1 // pred_check
      _
    $region31: #{tpu_custom_call.1} parent=1 // pred_check_branch
      %65 = sbr.rel (0) target = $region33
    $region32: #{tpu_custom_call.1} parent=1 // pred_region
      %67 = dma.done [#allocation8], 256
    $region33: #{tpu_custom_call.1} parent=1 // pred_fallthru
      _
    %p69 = scmp.eq.s32.totalorder 0, 0
    // Predicated region
    $region34: #{tpu_custom_call.1} parent=1 // pred_check
      %p70 = pneg %p69
    $region35: #{tpu_custom_call.1} parent=1 // pred_check_branch
      %72 = sbr.rel (%p70) target = $region37
    $region36: #{tpu_custom_call.1} parent=1 // pred_region
      %vm73 = vcmask 261120
      %74 = vst.msk [vmem:[#allocation2] sm:$0xff] %vm73, 0.0
      %75 = vst.msk [vmem:[#allocation3] sm:$0xff] %vm73, 0.0
    $region37: #{tpu_custom_call.1} parent=1 // pred_fallthru
      _
    %v76 = vld [vmem:[%s1] sm:$0xff]
    %v77 = vld [vmem:[#allocation7] sm:$0xf]
    %v78 = vld [vmem:[#allocation7 + $0x4] sm:$0xf]
    %v79 = vld [vmem:[#allocation7 + $0x8] sm:$0xf]
    %v80 = vld [vmem:[#allocation7 + $0xc] sm:$0xf]
    %s81 = smul.u32 0, 8
    %v82 = vld [vmem:[#allocation2] sm:$0xff]
    %v83 = vld [vmem:[#allocation3] sm:$0xff]
    %v84 = vld [vmem:[#allocation4] sm:$0xff]
    %v85 = vpack.c.bf16 %v82, %v82
    %v90 = vunpack.c.l.b16 %v77
    %v91 = vunpack.c.l.b16 %v78
    %v92 = vunpack.c.l.b16 %v79
    %v93 = vunpack.c.l.b16 %v80
    %v94 = vpack.c.b16 %v91, %v90
    %v95 = vpack.c.b16 %v93, %v92
    %vm98 = vcmask 261120
    %v100 = vsel %vm98, %v85, 0
    %102 = vmatpush.bf16.msra.mxu0 0
    %103 = vmatpush.bf16.msra.mxu0 0
    %104 = vmatpush.bf16.msra.mxu0 0
    %105 = vmatpush.bf16.msra.mxu0 0
    %106 = vmatpush.bf16.msra.mxu0 0
    %107 = vmatpush.bf16.msra.mxu0 0
    %108 = vmatpush.bf16.msra.mxu0 %v95
    %109 = vmatpush.bf16.msra.mxu0 %v94
    %110 = vmatmul.bf16.gmra.mxu0 %v100
    %v111 = vpop.f32.mrf.mxu0
    %v112 = vadd.f32 0.0, %v111
    %v113 = vpop.f32.mrf.mxu0
    %114 = vdwg.mxu0
    %v115 = vadd.f32 %v84, %v112
    %v116 = vxor.u32 %v115, 2147483648
    %v117 = vmul.f32 %v116, 1.442695
    %v118 = vpow.pop %v117
    %v119 = vadd.f32 %v118, 1.0
    %v120 = vrcp.pop %v119
    %v121 = vmul.f32 %v119, %v120
    %v122 = vsub.f32 1.0, %v121
    %v123 = vmul.f32 %v120, %v122
    %v124 = vadd.f32 %v120, %v123
    %vm125 = vweird.f32 %v119
    %vm126 = vweird.f32 %v120
    %vm127 = vmor %vm125, %vm126
    %v128 = vsel %vm127, %v120, %v124
    %v129 = vand.u32 2147483647, %v119
    %vm130 = vcmp.eq.f32.partialorder %v129, 8.507059e+37
    %v131 = vand.u32 %v119, 2147483648
    %v132 = vor.u32 1.1754944e-38, %v131
    %v133 = vsel %vm130, %v132, %v128
    %v134 = vmul.f32 1.0, %v133
    %v135 = vtanh.pop %v115
    %137 = vrot.lane.b32.xlu0 %v83, 32
    %v138 = vpop.permute.xlu0 %137
    %v140 = vmul.f32 %v134, %v138
    %142 = vrot.lane.b32.xlu0 %v135, 32
    %v143 = vpop.permute.xlu0 %142
    %v145 = vmul.f32 %v134, %v143
    %147 = vrot.lane.b32.xlu0 %v145, 32
    %v148 = vpop.permute.xlu0 %147
    %v150 = vadd.f32 %v140, %v148
    %v151 = vtanh.pop %v150
    %153 = vrot.lane.b32.xlu0 %v151, 32
    %v154 = vpop.permute.xlu0 %153
    %v156 = vmul.f32 %v134, %v154
    %v157 = vstv %s81
    %vm158 = vcmp.lt.s32.totalorder %v157, %v76
    %v159 = vsel %vm158, 1, 0
    %160 = vset.pattern.permute.xlu0 0
    %161 = vperm.xlu0 %160, %v159
    %v162 = vpop.permute.xlu0 %161
    %vm163 = vcmp.eq.s32.totalorder %v162, 1
    %165 = vrot.lane.b32.xlu0 %v82, 64
    %v166 = vpop.permute.xlu0 %165
    %v168 = vsel %vm163, %v156, %v166
    %v169 = vsel %vm163, %v150, %v138
    %s170 = scalar_lea.vmem [#allocation4], 8
    %v171 = vld [vmem:[%s170] sm:$0xff]
    %v172 = vpack.c.bf16 %v168, %v168
    %174 = vrot.lane.b32.xlu0 %v172, 64
    %v175 = vpop.permute.xlu0 %174
    %v177 = vsel %vm98, %v175, 0
    %179 = vmatpush.bf16.msra.mxu0 0
    %180 = vmatpush.bf16.msra.mxu0 0
    %181 = vmatpush.bf16.msra.mxu0 0
    %182 = vmatpush.bf16.msra.mxu0 0
    %183 = vmatpush.bf16.msra.mxu0 0
    %184 = vmatpush.bf16.msra.mxu0 0
    %185 = vmatpush.bf16.msra.mxu0 %v95
    %186 = vmatpush.bf16.msra.mxu0 %v94
    %187 = vmatmul.bf16.gmra.mxu0 %v177
    %v188 = vpop.f32.mrf.mxu0
    %v189 = vadd.f32 0.0, %v188
    %v190 = vpop.f32.mrf.mxu0
    %191 = vdwg.mxu0
    %v192 = vadd.f32 %v171, %v189
    %v193 = vxor.u32 %v192, 2147483648
    %v194 = vmul.f32 %v193, 1.442695
    %v195 = vpow.pop %v194
    %v196 = vadd.f32 %v195, 1.0
    %v197 = vrcp.pop %v196
    %v198 = vmul.f32 %v196, %v197
    %v199 = vsub.f32 1.0, %v198
    %v200 = vmul.f32 %v197, %v199
    %v201 = vadd.f32 %v197, %v200
    %vm202 = vweird.f32 %v196
    %vm203 = vweird.f32 %v197
    %vm204 = vmor %vm202, %vm203
    %v205 = vsel %vm204, %v197, %v201
    %v206 = vand.u32 2147483647, %v196
    %vm207 = vcmp.eq.f32.partialorder %v206, 8.507059e+37
    %v208 = vand.u32 %v196, 2147483648
    %v209 = vor.u32 1.1754944e-38, %v208
    %v210 = vsel %vm207, %v209, %v205
    %v211 = vmul.f32 1.0, %v210
    %v212 = vtanh.pop %v192
    %v213 = vmul.f32 %v211, %v169
    %215 = vrot.lane.b32.xlu0 %v212, 32
    %v216 = vpop.permute.xlu0 %215
    %v218 = vmul.f32 %v211, %v216
    %220 = vrot.lane.b32.xlu0 %v218, 32
    %v221 = vpop.permute.xlu0 %220
    %v223 = vadd.f32 %v213, %v221
    %v224 = vtanh.pop %v223
    %226 = vrot.lane.b32.xlu0 %v224, 32
    %v227 = vpop.permute.xlu0 %226
    %v229 = vmul.f32 %v211, %v227
    %s230 = sadd.s32 %s81, 1
    %v231 = vstv %s230
    %vm232 = vcmp.lt.s32.totalorder %v231, %v76
    %v233 = vsel %vm232, 1, 0
    %234 = vset.pattern.permute.xlu0 0
    %235 = vperm.xlu0 %234, %v233
    %v236 = vpop.permute.xlu0 %235
    %vm237 = vcmp.eq.s32.totalorder %v236, 1
    %v238 = vsel %vm237, %v229, %v168
    %v239 = vsel %vm237, %v223, %v169
    %s240 = scalar_lea.vmem [#allocation4], 16
    %v241 = vld [vmem:[%s240] sm:$0xff]
    %v242 = vpack.c.bf16 %v238, %v238
    %244 = vrot.lane.b32.xlu0 %v242, 64
    %v245 = vpop.permute.xlu0 %244
    %v247 = vsel %vm98, %v245, 0
    %249 = vmatpush.bf16.msra.mxu0 0
    %250 = vmatpush.bf16.msra.mxu0 0
    %251 = vmatpush.bf16.msra.mxu0 0
    %252 = vmatpush.bf16.msra.mxu0 0
    %253 = vmatpush.bf16.msra.mxu0 0
    %254 = vmatpush.bf16.msra.mxu0 0
    %255 = vmatpush.bf16.msra.mxu0 %v95
    %256 = vmatpush.bf16.msra.mxu0 %v94
    %257 = vmatmul.bf16.gmra.mxu0 %v247
    %v258 = vpop.f32.mrf.mxu0
    %v259 = vadd.f32 0.0, %v258
    %v260 = vpop.f32.mrf.mxu0
    %261 = vdwg.mxu0
    %v262 = vadd.f32 %v241, %v259
    %v263 = vxor.u32 %v262, 2147483648
    %v264 = vmul.f32 %v263, 1.442695
    %v265 = vpow.pop %v264
    %v266 = vadd.f32 %v265, 1.0
    %v267 = vrcp.pop %v266
    %v268 = vmul.f32 %v266, %v267
    %v269 = vsub.f32 1.0, %v268
    %v270 = vmul.f32 %v267, %v269
    %v271 = vadd.f32 %v267, %v270
    %vm272 = vweird.f32 %v266
    %vm273 = vweird.f32 %v267
    %vm274 = vmor %vm272, %vm273
    %v275 = vsel %vm274, %v267, %v271
    %v276 = vand.u32 2147483647, %v266
    %vm277 = vcmp.eq.f32.partialorder %v276, 8.507059e+37
    %v278 = vand.u32 %v266, 2147483648
    %v279 = vor.u32 1.1754944e-38, %v278
    %v280 = vsel %vm277, %v279, %v275
    %v281 = vmul.f32 1.0, %v280
    %v282 = vtanh.pop %v262
    %v283 = vmul.f32 %v281, %v239
    %285 = vrot.lane.b32.xlu0 %v282, 32
    %v286 = vpop.permute.xlu0 %285
    %v288 = vmul.f32 %v281, %v286
    %290 = vrot.lane.b32.xlu0 %v288, 32
    %v291 = vpop.permute.xlu0 %290
    %v293 = vadd.f32 %v283, %v291
    %v294 = vtanh.pop %v293
    %296 = vrot.lane.b32.xlu0 %v294, 32
    %v297 = vpop.permute.xlu0 %296
    %v299 = vmul.f32 %v281, %v297
    %s300 = sadd.s32 %s81, 2
    %v301 = vstv %s300
    %vm302 = vcmp.lt.s32.totalorder %v301, %v76
    %v303 = vsel %vm302, 1, 0
    %304 = vset.pattern.permute.xlu0 0
    %305 = vperm.xlu0 %304, %v303
    %v306 = vpop.permute.xlu0 %305
    %vm307 = vcmp.eq.s32.totalorder %v306, 1
    %v308 = vsel %vm307, %v299, %v238
    %v309 = vsel %vm307, %v293, %v239
    %s310 = scalar_lea.vmem [#allocation4], 24
    %v311 = vld [vmem:[%s310] sm:$0xff]
    %v312 = vpack.c.bf16 %v308, %v308
    %314 = vrot.lane.b32.xlu0 %v312, 64
    %v315 = vpop.permute.xlu0 %314
    %v317 = vsel %vm98, %v315, 0
    %319 = vmatpush.bf16.msra.mxu0 0
    %320 = vmatpush.bf16.msra.mxu0 0
    %321 = vmatpush.bf16.msra.mxu0 0
    %322 = vmatpush.bf16.msra.mxu0 0
    %323 = vmatpush.bf16.msra.mxu0 0
    %324 = vmatpush.bf16.msra.mxu0 0
    %325 = vmatpush.bf16.msra.mxu0 %v95
    %326 = vmatpush.bf16.msra.mxu0 %v94
    %327 = vmatmul.bf16.gmra.mxu0 %v317
    %v328 = vpop.f32.mrf.mxu0
    %v329 = vadd.f32 0.0, %v328
    %v330 = vpop.f32.mrf.mxu0
    %331 = vdwg.mxu0
    %v332 = vadd.f32 %v311, %v329
    %v333 = vxor.u32 %v332, 2147483648
    %v334 = vmul.f32 %v333, 1.442695
    %v335 = vpow.pop %v334
    %v336 = vadd.f32 %v335, 1.0
    %v337 = vrcp.pop %v336
    %v338 = vmul.f32 %v336, %v337
    %v339 = vsub.f32 1.0, %v338
    %v340 = vmul.f32 %v337, %v339
    %v341 = vadd.f32 %v337, %v340
    %vm342 = vweird.f32 %v336
    %vm343 = vweird.f32 %v337
    %vm344 = vmor %vm342, %vm343
    %v345 = vsel %vm344, %v337, %v341
    %v346 = vand.u32 2147483647, %v336
    %vm347 = vcmp.eq.f32.partialorder %v346, 8.507059e+37
    %v348 = vand.u32 %v336, 2147483648
    %v349 = vor.u32 1.1754944e-38, %v348
    %v350 = vsel %vm347, %v349, %v345
    %v351 = vmul.f32 1.0, %v350
    %v352 = vtanh.pop %v332
    %v353 = vmul.f32 %v351, %v309
    %355 = vrot.lane.b32.xlu0 %v352, 32
    %v356 = vpop.permute.xlu0 %355
    %v358 = vmul.f32 %v351, %v356
    %360 = vrot.lane.b32.xlu0 %v358, 32
    %v361 = vpop.permute.xlu0 %360
    %v363 = vadd.f32 %v353, %v361
    %v364 = vtanh.pop %v363
    %366 = vrot.lane.b32.xlu0 %v364, 32
    %v367 = vpop.permute.xlu0 %366
    %v369 = vmul.f32 %v351, %v367
    %s370 = sadd.s32 %s81, 3
    %v371 = vstv %s370
    %vm372 = vcmp.lt.s32.totalorder %v371, %v76
    %v373 = vsel %vm372, 1, 0
    %374 = vset.pattern.permute.xlu0 0
    %375 = vperm.xlu0 %374, %v373
    %v376 = vpop.permute.xlu0 %375
    %vm377 = vcmp.eq.s32.totalorder %v376, 1
    %v378 = vsel %vm377, %v369, %v308
    %v379 = vsel %vm377, %v363, %v309
    %s380 = scalar_lea.vmem [#allocation4], 32
    %v381 = vld [vmem:[%s380] sm:$0xff]
    %v382 = vpack.c.bf16 %v378, %v378
    %384 = vrot.lane.b32.xlu0 %v382, 64
    %v385 = vpop.permute.xlu0 %384
    %v387 = vsel %vm98, %v385, 0
    %389 = vmatpush.bf16.msra.mxu0 0
    %390 = vmatpush.bf16.msra.mxu0 0
    %391 = vmatpush.bf16.msra.mxu0 0
    %392 = vmatpush.bf16.msra.mxu0 0
    %393 = vmatpush.bf16.msra.mxu0 0
    %394 = vmatpush.bf16.msra.mxu0 0
    %395 = vmatpush.bf16.msra.mxu0 %v95
    %396 = vmatpush.bf16.msra.mxu0 %v94
    %397 = vmatmul.bf16.gmra.mxu0 %v387
    %v398 = vpop.f32.mrf.mxu0
    %v399 = vadd.f32 0.0, %v398
    %v400 = vpop.f32.mrf.mxu0
    %401 = vdwg.mxu0
    %v402 = vadd.f32 %v381, %v399
    %v403 = vxor.u32 %v402, 2147483648
    %v404 = vmul.f32 %v403, 1.442695
    %v405 = vpow.pop %v404
    %v406 = vadd.f32 %v405, 1.0
    %v407 = vrcp.pop %v406
    %v408 = vmul.f32 %v406, %v407
    %v409 = vsub.f32 1.0, %v408
    %v410 = vmul.f32 %v407, %v409
    %v411 = vadd.f32 %v407, %v410
    %vm412 = vweird.f32 %v406
    %vm413 = vweird.f32 %v407
    %vm414 = vmor %vm412, %vm413
    %v415 = vsel %vm414, %v407, %v411
    %v416 = vand.u32 2147483647, %v406
    %vm417 = vcmp.eq.f32.partialorder %v416, 8.507059e+37
    %v418 = vand.u32 %v406, 2147483648
    %v419 = vor.u32 1.1754944e-38, %v418
    %v420 = vsel %vm417, %v419, %v415
    %v421 = vmul.f32 1.0, %v420
    %v422 = vtanh.pop %v402
    %v423 = vmul.f32 %v421, %v379
    %425 = vrot.lane.b32.xlu0 %v422, 32
    %v426 = vpop.permute.xlu0 %425
    %v428 = vmul.f32 %v421, %v426
    %430 = vrot.lane.b32.xlu0 %v428, 32
    %v431 = vpop.permute.xlu0 %430
    %v433 = vadd.f32 %v423, %v431
    %v434 = vtanh.pop %v433
    %436 = vrot.lane.b32.xlu0 %v434, 32
    %v437 = vpop.permute.xlu0 %436
    %v439 = vmul.f32 %v421, %v437
    %s440 = sadd.s32 %s81, 4
    %v441 = vstv %s440
    %vm442 = vcmp.lt.s32.totalorder %v441, %v76
    %v443 = vsel %vm442, 1, 0
    %444 = vset.pattern.permute.xlu0 0
    %445 = vperm.xlu0 %444, %v443
    %v446 = vpop.permute.xlu0 %445
    %vm447 = vcmp.eq.s32.totalorder %v446, 1
    %v448 = vsel %vm447, %v439, %v378
    %v449 = vsel %vm447, %v433, %v379
    %s450 = scalar_lea.vmem [#allocation4], 40
    %v451 = vld [vmem:[%s450] sm:$0xff]
    %v452 = vpack.c.bf16 %v448, %v448
    %454 = vrot.lane.b32.xlu0 %v452, 64
    %v455 = vpop.permute.xlu0 %454
    %v457 = vsel %vm98, %v455, 0
    %459 = vmatpush.bf16.msra.mxu0 0
    %460 = vmatpush.bf16.msra.mxu0 0
    %461 = vmatpush.bf16.msra.mxu0 0
    %462 = vmatpush.bf16.msra.mxu0 0
    %463 = vmatpush.bf16.msra.mxu0 0
    %464 = vmatpush.bf16.msra.mxu0 0
    %465 = vmatpush.bf16.msra.mxu0 %v95
    %466 = vmatpush.bf16.msra.mxu0 %v94
    %467 = vmatmul.bf16.gmra.mxu0 %v457
    %v468 = vpop.f32.mrf.mxu0
    %v469 = vadd.f32 0.0, %v468
    %v470 = vpop.f32.mrf.mxu0
    %471 = vdwg.mxu0
    %v472 = vadd.f32 %v451, %v469
    %v473 = vxor.u32 %v472, 2147483648
    %v474 = vmul.f32 %v473, 1.442695
    %v475 = vpow.pop %v474
    %v476 = vadd.f32 %v475, 1.0
    %v477 = vrcp.pop %v476
    %v478 = vmul.f32 %v476, %v477
    %v479 = vsub.f32 1.0, %v478
    %v480 = vmul.f32 %v477, %v479
    %v481 = vadd.f32 %v477, %v480
    %vm482 = vweird.f32 %v476
    %vm483 = vweird.f32 %v477
    %vm484 = vmor %vm482, %vm483
    %v485 = vsel %vm484, %v477, %v481
    %v486 = vand.u32 2147483647, %v476
    %vm487 = vcmp.eq.f32.partialorder %v486, 8.507059e+37
    %v488 = vand.u32 %v476, 2147483648
    %v489 = vor.u32 1.1754944e-38, %v488
    %v490 = vsel %vm487, %v489, %v485
    %v491 = vmul.f32 1.0, %v490
    %v492 = vtanh.pop %v472
    %v493 = vmul.f32 %v491, %v449
    %495 = vrot.lane.b32.xlu0 %v492, 32
    %v496 = vpop.permute.xlu0 %495
    %v498 = vmul.f32 %v491, %v496
    %500 = vrot.lane.b32.xlu0 %v498, 32
    %v501 = vpop.permute.xlu0 %500
    %v503 = vadd.f32 %v493, %v501
    %v504 = vtanh.pop %v503
    %506 = vrot.lane.b32.xlu0 %v504, 32
    %v507 = vpop.permute.xlu0 %506
    %v509 = vmul.f32 %v491, %v507
    %s510 = sadd.s32 %s81, 5
    %v511 = vstv %s510
    %vm512 = vcmp.lt.s32.totalorder %v511, %v76
    %v513 = vsel %vm512, 1, 0
    %514 = vset.pattern.permute.xlu0 0
    %515 = vperm.xlu0 %514, %v513
    %v516 = vpop.permute.xlu0 %515
    %vm517 = vcmp.eq.s32.totalorder %v516, 1
    %v518 = vsel %vm517, %v509, %v448
    %v519 = vsel %vm517, %v503, %v449
    %s520 = scalar_lea.vmem [#allocation4], 48
    %v521 = vld [vmem:[%s520] sm:$0xff]
    %v522 = vpack.c.bf16 %v518, %v518
    %524 = vrot.lane.b32.xlu0 %v522, 64
    %v525 = vpop.permute.xlu0 %524
    %v527 = vsel %vm98, %v525, 0
    %529 = vmatpush.bf16.msra.mxu0 0
    %530 = vmatpush.bf16.msra.mxu0 0
    %531 = vmatpush.bf16.msra.mxu0 0
    %532 = vmatpush.bf16.msra.mxu0 0
    %533 = vmatpush.bf16.msra.mxu0 0
    %534 = vmatpush.bf16.msra.mxu0 0
    %535 = vmatpush.bf16.msra.mxu0 %v95
    %536 = vmatpush.bf16.msra.mxu0 %v94
    %537 = vmatmul.bf16.gmra.mxu0 %v527
    %v538 = vpop.f32.mrf.mxu0
    %v539 = vadd.f32 0.0, %v538
    %v540 = vpop.f32.mrf.mxu0
    %541 = vdwg.mxu0
    %v542 = vadd.f32 %v521, %v539
    %v543 = vxor.u32 %v542, 2147483648
    %v544 = vmul.f32 %v543, 1.442695
    %v545 = vpow.pop %v544
    %v546 = vadd.f32 %v545, 1.0
    %v547 = vrcp.pop %v546
    %v548 = vmul.f32 %v546, %v547
    %v549 = vsub.f32 1.0, %v548
    %v550 = vmul.f32 %v547, %v549
    %v551 = vadd.f32 %v547, %v550
    %vm552 = vweird.f32 %v546
    %vm553 = vweird.f32 %v547
    %vm554 = vmor %vm552, %vm553
    %v555 = vsel %vm554, %v547, %v551
    %v556 = vand.u32 2147483647, %v546
    %vm557 = vcmp.eq.f32.partialorder %v556, 8.507059e+37
    %v558 = vand.u32 %v546, 2147483648
    %v559 = vor.u32 1.1754944e-38, %v558
    %v560 = vsel %vm557, %v559, %v555
    %v561 = vmul.f32 1.0, %v560
    %v562 = vtanh.pop %v542
    %v563 = vmul.f32 %v561, %v519
    %565 = vrot.lane.b32.xlu0 %v562, 32
    %v566 = vpop.permute.xlu0 %565
    %v568 = vmul.f32 %v561, %v566
    %570 = vrot.lane.b32.xlu0 %v568, 32
    %v571 = vpop.permute.xlu0 %570
    %v573 = vadd.f32 %v563, %v571
    %v574 = vtanh.pop %v573
    %576 = vrot.lane.b32.xlu0 %v574, 32
    %v577 = vpop.permute.xlu0 %576
    %v579 = vmul.f32 %v561, %v577
    %s580 = sadd.s32 %s81, 6
    %v581 = vstv %s580
    %vm582 = vcmp.lt.s32.totalorder %v581, %v76
    %v583 = vsel %vm582, 1, 0
    %584 = vset.pattern.permute.xlu0 0
    %585 = vperm.xlu0 %584, %v583
    %v586 = vpop.permute.xlu0 %585
    %vm587 = vcmp.eq.s32.totalorder %v586, 1
    %v588 = vsel %vm587, %v579, %v518
    %v589 = vsel %vm587, %v573, %v519
    %s590 = scalar_lea.vmem [#allocation4], 56
    %v591 = vld [vmem:[%s590] sm:$0xff]
    %v592 = vpack.c.bf16 %v588, %v588
    %594 = vrot.lane.b32.xlu0 %v592, 64
    %v595 = vpop.permute.xlu0 %594
    %v597 = vsel %vm98, %v595, 0
    %599 = vmatpush.bf16.msra.mxu0 0
    %600 = vmatpush.bf16.msra.mxu0 0
    %601 = vmatpush.bf16.msra.mxu0 0
    %602 = vmatpush.bf16.msra.mxu0 0
    %603 = vmatpush.bf16.msra.mxu0 0
    %604 = vmatpush.bf16.msra.mxu0 0
    %605 = vmatpush.bf16.msra.mxu0 %v95
    %606 = vmatpush.bf16.msra.mxu0 %v94
    %607 = vmatmul.bf16.gmra.mxu0 %v597
    %v608 = vpop.f32.mrf.mxu0
    %v609 = vadd.f32 0.0, %v608
    %v610 = vpop.f32.mrf.mxu0
    %611 = vdwg.mxu0
    %v612 = vadd.f32 %v591, %v609
    %v613 = vxor.u32 %v612, 2147483648
    %v614 = vmul.f32 %v613, 1.442695
    %v615 = vpow.pop %v614
    %v616 = vadd.f32 %v615, 1.0
    %v617 = vrcp.pop %v616
    %v618 = vmul.f32 %v616, %v617
    %v619 = vsub.f32 1.0, %v618
    %v620 = vmul.f32 %v617, %v619
    %v621 = vadd.f32 %v617, %v620
    %vm622 = vweird.f32 %v616
    %vm623 = vweird.f32 %v617
    %vm624 = vmor %vm622, %vm623
    %v625 = vsel %vm624, %v617, %v621
    %v626 = vand.u32 2147483647, %v616
    %vm627 = vcmp.eq.f32.partialorder %v626, 8.507059e+37
    %v628 = vand.u32 %v616, 2147483648
    %v629 = vor.u32 1.1754944e-38, %v628
    %v630 = vsel %vm627, %v629, %v625
    %v631 = vmul.f32 1.0, %v630
    %v632 = vtanh.pop %v612
    %v633 = vmul.f32 %v631, %v589
    %635 = vrot.lane.b32.xlu0 %v632, 32
    %v636 = vpop.permute.xlu0 %635
    %v638 = vmul.f32 %v631, %v636
    %640 = vrot.lane.b32.xlu0 %v638, 32
    %v641 = vpop.permute.xlu0 %640
    %v643 = vadd.f32 %v633, %v641
    %v644 = vtanh.pop %v643
    %646 = vrot.lane.b32.xlu0 %v644, 32
    %v647 = vpop.permute.xlu0 %646
    %v649 = vmul.f32 %v631, %v647
    %s650 = sadd.s32 %s81, 7
    %v651 = vstv %s650
    %vm652 = vcmp.lt.s32.totalorder %v651, %v76
    %v653 = vsel %vm652, 1, 0
    %654 = vset.pattern.permute.xlu0 0
    %655 = vperm.xlu0 %654, %v653
    %v656 = vpop.permute.xlu0 %655
    %vm657 = vcmp.eq.s32.totalorder %v656, 1
    %v658 = vsel %vm657, %v649, %v588
    %v659 = vsel %vm657, %v643, %v589
    %661 = vrot.lane.b32.xlu0 %v658, 64
    %v662 = vpop.permute.xlu0 %661
    %664 = vst.msk [vmem:[#allocation2] sm:$0xff] %vm98, %v662
    %666 = vrot.lane.b32.xlu0 %v659, 96
    %v667 = vpop.permute.xlu0 %666
    %669 = vst.msk [vmem:[#allocation3] sm:$0xff] %vm98, %v667
    // Predicated region
    $region38: #{tpu_custom_call.1} parent=1 // pred_check
      %p670 = pneg %p69
    $region39: #{tpu_custom_call.1} parent=1 // pred_check_branch
      %672 = sbr.rel (%p670) target = $region41
    $region40: #{tpu_custom_call.1} parent=1 // pred_region
      %v673 = vpack.c.bf16 %v658, %v658
      %v674 = vld [vmem:[#allocation9] sm:$0xf]
      %v675 = vld [vmem:[#allocation9 + $0x4] sm:$0xf]
      %v676 = vld [vmem:[#allocation9 + $0x8] sm:$0xf]
      %v677 = vld [vmem:[#allocation9 + $0xc] sm:$0xf]
      %v678 = vld [vmem:[%s4] sm:$0x1]
      %v680 = vperm.slane %v678, 0
      %683 = vrot.lane.b32.xlu0 %v673, 64
      %v684 = vpop.permute.xlu0 %683
      %v689 = vunpack.c.l.b16 %v674
      %v690 = vunpack.c.l.b16 %v675
      %v691 = vunpack.c.l.b16 %v676
      %v692 = vunpack.c.l.b16 %v677
      %v693 = vpack.c.b16 %v690, %v689
      %v694 = vpack.c.b16 %v692, %v691
      %v698 = vsel %vm98, %v684, 0
      %700 = vmatpush.bf16.msra.mxu0 0
      %701 = vmatpush.bf16.msra.mxu0 0
      %702 = vmatpush.bf16.msra.mxu0 0
      %703 = vmatpush.bf16.msra.mxu0 0
      %704 = vmatpush.bf16.msra.mxu0 0
      %705 = vmatpush.bf16.msra.mxu0 0
      %706 = vmatpush.bf16.msra.mxu0 %v694
      %707 = vmatpush.bf16.msra.mxu0 %v693
      %708 = vmatmul.bf16.gmra.mxu0 %v698
      %v709 = vpop.f32.mrf.mxu0
      %v710 = vadd.f32 %v680, %v709
      %v711 = vpop.f32.mrf.mxu0
      %712 = vdwg.mxu0
      %v713 = vlaneseq
      %v714 = vand.u32 %v713, 127
      %vm715 = vcmp.lt.s32.totalorder %v714, 4
      %v716 = vsel %vm715, %v710, -1e+30
      %717 = vmax.xlane.f32.xlu0 %v716
      %v718 = vpop.xlane.xlu0 %717
      %v719 = vsub.f32 %v716, %v718
      %v720 = vmul.f32 %v719, 1.442695
      %v721 = vpow.pop %v720
      %722 = vadd.xlane.f32.xlu0 %v721
      %v723 = vpop.xlane.xlu0 %722
      %v724 = vlog2.pop %v723
      %v725 = vmul.f32 %v724, 0.6931472
      %v726 = vsub.f32 %v719, %v725
      %727 = vst [vmem:[#allocation10] sm:$0xff] %v726
    $region41: #{tpu_custom_call.1} parent=1 // pred_fallthru
      _
    // Predicated region
    $region42: #{tpu_custom_call.1} parent=1 // pred_check
      _
    $region43: #{tpu_custom_call.1} parent=1 // pred_check_branch
      %729 = sbr.rel (0) target = $region45
    $region44: #{tpu_custom_call.1} parent=1 // pred_region
      %731 = vsyncadd [#allocation6], 0
      %s733 = sshll.u32 [#allocation10], 4
      %s734 = int_to_ptr.vmem [resolvable:$true] %s733
      %s735 = sshll.u32 %s5, 4
      %s736 = int_to_ptr.hbm [resolvable:$true] %s735
      %738 = dma.vmem_to_hbm [thread:$0]  %s734, 128, %s736, [#allocation6]
    $region45: #{tpu_custom_call.1} parent=1 // pred_fallthru
      _
    // Predicated region
    $region46: #{tpu_custom_call.1} parent=1 // pred_check
      _
    $region47: #{tpu_custom_call.1} parent=1 // pred_check_branch
      %740 = sbr.rel (0) target = $region49
    $region48: #{tpu_custom_call.1} parent=1 // pred_region
      %742 = dma.done [#allocation6], 128
    $region49: #{tpu_custom_call.1} parent=1 // pred_fallthru
      _
    %743 = vsyncpa [#allocation5], 1
    %744 = vsyncpa [#allocation8], 1
    %745 = vsyncpa [#allocation6], 1

</llo_original>
